<compile_context>
chip_gen: v7x
topology: tpu7x:2x2x1
jax: 0.10.0
libtpu: 0.0.40
codegen_flags: <defaults>
</compile_context>

<pallas_src>
import jax
import jax.numpy as jnp
from jax.experimental import pallas as pl
from jax.experimental.pallas import tpu as pltpu

# ---- small synthetic shapes (stand-ins for the real 224x224 / swin_large) ----
B = 2            # batch
C = 3            # CFG.in_chans
IMG = 16         # stand-in for CFG.IMG_SIZE = 224
PATCH = 4        # swin patch size
P = C * PATCH * PATCH            # flattened patch dim (48)
D = 64           # stand-in for backbone num_features (swin_large = 1536)
HID = 128        # model.head output dim (Linear(num_features, 128))
OUT = 1          # CFG.TARGET_DIM


def pet2_kernel(xp_ref, w_emb_ref, b_emb_ref, w_hd_ref, b_hd_ref, out_ref):
    # Patch-embed + global-average-pool, pool folded through the linear embed:
    # pooled_features = mean_patches(x) @ W_emb + b_emb        -> [B, D]
    pooled = jnp.dot(xp_ref[...], w_emb_ref[...],
                     preferred_element_type=jnp.float32)        # MXU, f32 acc
    pooled = pooled + b_emb_ref[...]                            # [1, D] bcast (f32)
    # Fused head+dense (two linear layers, no activation) as a VPU
    # multiply + lane reduce instead of a [B,128]@[128,1] MXU matmul.
    y = jnp.sum(pooled * w_hd_ref[...], axis=-1, keepdims=True)  # [B, 1]
    out_ref[...] = y + b_hd_ref[...]                             # [1, 1] bcast


def _full_spec(shape):
    # Whole-array block at grid point 0 (tiny problem -> single grid step).
    return pl.BlockSpec(shape, lambda i: tuple(0 for _ in shape))


def _patch_mean(x_nchw):
    # Mean over all non-overlapping PATCHxPATCH patches of each (c, kh, kw)
    # element, directly from NCHW (no 6-D transpose). Result order matches a
    # torch Conv2d weight [D, C, kh, kw] reshaped to [D, C*kh*kw] and transposed.
    b, c, h, w = x_nchw.shape
    gh, gw = h // PATCH, w // PATCH
    xm = x_nchw.reshape(b, c, gh, PATCH, gw, PATCH).mean(axis=(2, 4))
    return xm.reshape(b, c * PATCH * PATCH).astype(jnp.float32)   # [B, P]


def pet2_forward(x_nchw, params, compute_dtype=jnp.bfloat16):
    b = x_nchw.shape[0]
    # Pool-fold (linear patch embed commutes with the average pool).
    xp = _patch_mean(x_nchw).astype(compute_dtype)                 # [B, P]
    w_emb = params['w_emb'].astype(compute_dtype)                  # [P, D]
    # Head+dense fusion (both purely linear).
    w_hd = (params['w_head'] @ params['w_dense']).T                # [1, D] f32
    b_hd = params['b_head'] @ params['w_dense'] + params['b_dense']  # [1, 1] f32

    args = (xp, w_emb, params['b_emb'], w_hd, b_hd)
    out = pl.pallas_call(
        pet2_kernel,
        out_shape=jax.ShapeDtypeStruct((b, OUT), jnp.float32),
        grid=(1,),
        in_specs=[_full_spec(a.shape) for a in args],
        out_specs=_full_spec((b, OUT)),
        # At real shapes: dimension_semantics=("parallel",) over a batch grid
        # axis (v7x 2 TCs) and vmem_limit_bytes above the scoped default.
        compiler_params=pltpu.CompilerParams(
            dimension_semantics=("arbitrary",)),
    )(*args)
    return out.squeeze(-1)                                         # [B]


def init_params(key):
    k = jax.random.split(key, 6)
    scale = 0.05
    return {
        'w_emb':   scale * jax.random.normal(k[0], (P, D),   jnp.float32),
        'b_emb':   scale * jax.random.normal(k[1], (1, D),   jnp.float32),
        'w_head':  scale * jax.random.normal(k[2], (D, HID), jnp.float32),
        'b_head':  scale * jax.random.normal(k[3], (1, HID), jnp.float32),
        'w_dense': scale * jax.random.normal(k[4], (HID, OUT), jnp.float32),
        'b_dense': scale * jax.random.normal(k[5], (1, OUT),  jnp.float32),
    }


def pet2_forward_ref_f32(x_nchw, params):
    # Full-precision reference with the original op order
    # (patch-embed all tokens -> mean -> head -> dense).
    b, c, h, w = x_nchw.shape
    gh, gw = h // PATCH, w // PATCH
    patches = x_nchw.reshape(b, c, gh, PATCH, gw, PATCH)
    patches = patches.transpose(0, 2, 4, 1, 3, 5).reshape(b, gh * gw, -1)
    tok = jnp.einsum('btp,pd->btd', patches, params['w_emb']) + params['b_emb']
    pooled = tok.mean(axis=1)
    hid = pooled @ params['w_head'] + params['b_head']
    y = hid @ params['w_dense'] + params['b_dense']
    return y.squeeze(-1)


def pet2_forward_ref_matched(x_nchw, params, compute_dtype=jnp.bfloat16):
    # Pure-JAX reference mirroring the kernel math (pool-fold, head+dense
    # fusion, bf16 MXU operands) for a tight correctness check.
    xp = _patch_mean(x_nchw).astype(compute_dtype)
    w_emb = params['w_emb'].astype(compute_dtype)
    pooled = jnp.dot(xp, w_emb, preferred_element_type=jnp.float32)
    pooled = pooled + params['b_emb']
    w_hd = (params['w_head'] @ params['w_dense']).T
    b_hd = params['b_head'] @ params['w_dense'] + params['b_dense']
    y = jnp.sum(pooled * w_hd, axis=-1, keepdims=True) + b_hd
    return y.squeeze(-1)


if __name__ == "__main__":
    key = jax.random.PRNGKey(0)
    k_x, k_p = jax.random.split(key)
    x = jax.random.normal(k_x, (B, C, IMG, IMG), jnp.float32)   # NCHW like PyTorch
    params = init_params(k_p)

    out = pet2_forward(x, params)
    out = jax.block_until_ready(out)

    ref_same = pet2_forward_ref_matched(x, params)   # same math, tight check
    ref_f32 = pet2_forward_ref_f32(x, params)        # original semantics, loose
    assert out.shape == (B,), out.shape
    assert jnp.allclose(out, ref_same, atol=1e-4, rtol=1e-4), (out, ref_same)
    assert jnp.allclose(out, ref_f32, atol=1e-2, rtol=1e-2), (out, ref_f32)
    print("KERNEL_OK")
</pallas_src>

<mosaic_0001>
module attributes {stable_mosaic.version = 11 : i64} {
  func.func @pet2_kernel(%arg0: i32, %arg1: memref<2x48xbf16, #tpu.memory_space<vmem>>, %arg2: memref<48x64xbf16, #tpu.memory_space<vmem>>, %arg3: memref<1x64xf32, #tpu.memory_space<vmem>>, %arg4: memref<1x64xf32, #tpu.memory_space<vmem>>, %arg5: memref<1x1xf32, #tpu.memory_space<vmem>>, %arg6: memref<2x1xf32, #tpu.memory_space<vmem>>) attributes {dimension_semantics = [#tpu.dimension_semantics<arbitrary>], iteration_bounds = array<i64: 1>, scalar_prefetch = 0 : i64, scratch_operands = 0 : i64, tpu.core_type = #tpu.core_type<tc>, window_params = [{pipeline_mode = #tpu.pipeline_mode<synchronous>, transform_indices = @transform_0, window_bounds = array<i64: 2, 48>}, {pipeline_mode = #tpu.pipeline_mode<synchronous>, transform_indices = @transform_1, window_bounds = array<i64: 48, 64>}, {pipeline_mode = #tpu.pipeline_mode<synchronous>, transform_indices = @transform_2, window_bounds = array<i64: 1, 64>}, {pipeline_mode = #tpu.pipeline_mode<synchronous>, transform_indices = @transform_3, window_bounds = array<i64: 1, 64>}, {pipeline_mode = #tpu.pipeline_mode<synchronous>, transform_indices = @transform_4, window_bounds = array<i64: 1, 1>}, {pipeline_mode = #tpu.pipeline_mode<synchronous>, transform_indices = @transform_5, window_bounds = array<i64: 2, 1>}]} {
    %c0 = arith.constant 0 : index
    %c0_0 = arith.constant 0 : index
    %0 = vector.load %arg1[%c0, %c0_0] : memref<2x48xbf16, #tpu.memory_space<vmem>>, vector<2x48xbf16>
    %c0_1 = arith.constant 0 : index
    %c0_2 = arith.constant 0 : index
    %1 = vector.load %arg2[%c0_1, %c0_2] : memref<48x64xbf16, #tpu.memory_space<vmem>>, vector<48x64xbf16>
    %cst = arith.constant dense<0.000000e+00> : vector<2x64xf32>
    %2 = tpu.matmul %0, %1, %cst {dimension_numbers = #tpu.dot_dimension_numbers<[1], [0], [0], [1], [0, 0, 1, 1], [], []>} : vector<2x48xbf16>, vector<48x64xbf16>, vector<2x64xf32> -> vector<2x64xf32>
    %c0_3 = arith.constant 0 : index
    %c0_4 = arith.constant 0 : index
    %3 = vector.load %arg3[%c0_3, %c0_4] : memref<1x64xf32, #tpu.memory_space<vmem>>, vector<1x64xf32>
    %4 = vector.broadcast %3 : vector<1x64xf32> to vector<2x64xf32>
    %5 = arith.addf %2, %4 : vector<2x64xf32>
    %c0_5 = arith.constant 0 : index
    %c0_6 = arith.constant 0 : index
    %6 = vector.load %arg4[%c0_5, %c0_6] : memref<1x64xf32, #tpu.memory_space<vmem>>, vector<1x64xf32>
    %7 = vector.broadcast %6 : vector<1x64xf32> to vector<2x64xf32>
    %8 = arith.mulf %5, %7 : vector<2x64xf32>
    %cst_7 = arith.constant dense<0.000000e+00> : vector<2xf32>
    %9 = vector.multi_reduction <add>, %8, %cst_7 [1] : vector<2x64xf32> to vector<2xf32>
    %10 = vector.shape_cast %9 : vector<2xf32> to vector<2x1xf32>
    %c0_8 = arith.constant 0 : index
    %c0_9 = arith.constant 0 : index
    %11 = vector.load %arg5[%c0_8, %c0_9] : memref<1x1xf32, #tpu.memory_space<vmem>>, vector<1x1xf32>
    %12 = vector.broadcast %11 : vector<1x1xf32> to vector<2x1xf32>
    %13 = arith.addf %10, %12 : vector<2x1xf32>
    %c0_10 = arith.constant 0 : index
    %c0_11 = arith.constant 0 : index
    %14 = vector.load %arg6[%c0_10, %c0_11] : memref<2x1xf32, #tpu.memory_space<vmem>>, vector<2x1xf32>
    tpu.vector_store %arg6[%c0_10, %c0_11], %13 {strides = array<i32>} : memref<2x1xf32, #tpu.memory_space<vmem>>, vector<2x1xf32>,
    return
  }
  func.func @transform_0(%arg0: i32) -> (i32, i32) {
    %c0_i32 = arith.constant 0 : i32
    %c0_i32_0 = arith.constant 0 : i32
    %c0_i32_1 = arith.constant 0 : i32
    return %c0_i32, %c0_i32_0 : i32, i32
  }
  func.func @transform_1(%arg0: i32) -> (i32, i32) {
    %c0_i32 = arith.constant 0 : i32
    %c0_i32_0 = arith.constant 0 : i32
    %c0_i32_1 = arith.constant 0 : i32
    return %c0_i32, %c0_i32_0 : i32, i32
  }
  func.func @transform_2(%arg0: i32) -> (i32, i32) {
    %c0_i32 = arith.constant 0 : i32
    %c0_i32_0 = arith.constant 0 : i32
    %c0_i32_1 = arith.constant 0 : i32
    return %c0_i32, %c0_i32_0 : i32, i32
  }
  func.func @transform_3(%arg0: i32) -> (i32, i32) {
    %c0_i32 = arith.constant 0 : i32
    %c0_i32_0 = arith.constant 0 : i32
    %c0_i32_1 = arith.constant 0 : i32
    return %c0_i32, %c0_i32_0 : i32, i32
  }
  func.func @transform_4(%arg0: i32) -> (i32, i32) {
    %c0_i32 = arith.constant 0 : i32
    %c0_i32_0 = arith.constant 0 : i32
    %c0_i32_1 = arith.constant 0 : i32
    return %c0_i32, %c0_i32_0 : i32, i32
  }
  func.func @transform_5(%arg0: i32) -> (i32, i32) {
    %c0_i32 = arith.constant 0 : i32
    %c0_i32_0 = arith.constant 0 : i32
    %c0_i32_1 = arith.constant 0 : i32
    return %c0_i32, %c0_i32_0 : i32, i32
  }
}

</mosaic_0001>

<llo_original>
// kernel: tpu_custom_call.1
$region0: #{tpu_custom_call.1}
  #allocation0 [shape = 'u32[]', space=smem, size = 0x4, offset = 0x4, fixed_abs, tag = 'smem constant byte address 0x4 - core index']
  #allocation1 [shape = 'u32[144,128]{1,0:T(1,128)}', space=vmem, size = 0x12000, scoped, tag = 'internal scratch']
  #allocation2 [shape = 'f32[1,1]{1,0:T(1,128)S(1)}', space=vmem, size = 0x200, scoped, tag = 'scoped memory for tpu_custom_call.1']
  %s0 = inlined_call_operand.vmem [shape: bf16[2,48], index: 0, kind: input, shape index: {}]
  %s1 = inlined_call_operand.hbm [shape: bf16[48,64], index: 1, kind: input, shape index: {}]
  %s2 = inlined_call_operand.vmem [shape: f32[1,64], index: 2, kind: input, shape index: {}]
  %s3 = inlined_call_operand.vmem [shape: f32[1,64], index: 3, kind: input, shape index: {}]
  %s4 = inlined_call_operand.<no memory space> [shape: f32[1,1], index: 4, kind: input, shape index: {}]
  %s5 = inlined_call_operand.vmem [shape: f32[2,1], index: 5, kind: output, shape index: {}]
  %s6 = sld [smem:[#allocation0]]
  $region34: #{tpu_custom_call.1} parent=0
    _
  %s8 = ssub.s32 1, %s6
  %s9 = scalar_select 0, %s8, %s6
  %v10 = vstv %s4
  %11 = vst [vmem:[#allocation2] sm:$0x1] %v10
  $region1: #{tpu_custom_call.1} parent=0
    #allocation3 [shape = 'u8[12288]{0}', space=vmem, size = 0x3000, scoped, tag = 'input window, operand 1, single buffered']
    #allocation4 [shape = 's32[1]{0}', space=sflag, size = 0x4, scoped, tag = 'scoped memory for tpu_custom_call.1']
    %12 = vsyncpa [#allocation4], 0
    // Predicated region
    $region2: #{tpu_custom_call.1} parent=1 // pred_check
      _
    $region3: #{tpu_custom_call.1} parent=1 // pred_check_branch
      %14 = sbr.rel (0) target = $region5
    $region4: #{tpu_custom_call.1} parent=1 // pred_region
      _
    $region5: #{tpu_custom_call.1} parent=1 // pred_fallthru
      _
    // Predicated region
    $region6: #{tpu_custom_call.1} parent=1 // pred_check
      _
    $region7: #{tpu_custom_call.1} parent=1 // pred_check_branch
      %16 = sbr.rel (0) target = $region9
    $region8: #{tpu_custom_call.1} parent=1 // pred_region
      %s18 = ssub.s32 384, 384
      %19 = vsyncadd [#allocation4], %s18
      %s20 = sshll.u32 [#allocation3], 4
      %s21 = int_to_ptr.vmem [resolvable:$true] %s20
      %26 = dma.hbm_to_vmem [thread:$0]  %s1, 384, %s21, [#allocation4], 64, 64, 4
    $region9: #{tpu_custom_call.1} parent=1 // pred_fallthru
      _
    // Predicated region
    $region10: #{tpu_custom_call.1} parent=1 // pred_check
      _
    $region11: #{tpu_custom_call.1} parent=1 // pred_check_branch
      %28 = sbr.rel (0) target = $region13
    $region12: #{tpu_custom_call.1} parent=1 // pred_region
      _
    $region13: #{tpu_custom_call.1} parent=1 // pred_fallthru
      _
    // Predicated region
    $region14: #{tpu_custom_call.1} parent=1 // pred_check
      _
    $region15: #{tpu_custom_call.1} parent=1 // pred_check_branch
      %30 = sbr.rel (0) target = $region17
    $region16: #{tpu_custom_call.1} parent=1 // pred_region
      _
    $region17: #{tpu_custom_call.1} parent=1 // pred_fallthru
      _
    // Predicated region
    $region18: #{tpu_custom_call.1} parent=1 // pred_check
      _
    $region19: #{tpu_custom_call.1} parent=1 // pred_check_branch
      %32 = sbr.rel (0) target = $region21
    $region20: #{tpu_custom_call.1} parent=1 // pred_region
      _
    $region21: #{tpu_custom_call.1} parent=1 // pred_fallthru
      _
    // Predicated region
    $region22: #{tpu_custom_call.1} parent=1 // pred_check
      _
    $region23: #{tpu_custom_call.1} parent=1 // pred_check_branch
      %34 = sbr.rel (0) target = $region25
    $region24: #{tpu_custom_call.1} parent=1 // pred_region
      %35 = dma.done [#allocation4], 384
    $region25: #{tpu_custom_call.1} parent=1 // pred_fallthru
      _
    %v37 = vld [vmem:[%s0] sm:$0x1]
    %v38 = vld [vmem:[#allocation3] sm:$0xf]
    %v39 = vld [vmem:[#allocation3 + $0x4] sm:$0xf]
    %v40 = vld [vmem:[#allocation3 + $0x8] sm:$0xf]
    %v41 = vld [vmem:[#allocation3 + $0xc] sm:$0xf]
    %v42 = vld [vmem:[#allocation3 + $0x10] sm:$0xf]
    %v43 = vld [vmem:[#allocation3 + $0x14] sm:$0xf]
    %v44 = vld [vmem:[%s2] sm:$0x1]
    %v46 = vlaneseq
    %v47 = vshrl.u32 %v46, 7
    %v48 = vsub.s32 0, %v47
    %v49 = vrot.slane %v44, %v48
    %v57 = vunpack.c.l.b16 %v38
    %v58 = vunpack.c.l.b16 %v39
    %v59 = vunpack.c.l.b16 %v40
    %v60 = vunpack.c.l.b16 %v41
    %v61 = vunpack.c.l.b16 %v42
    %v62 = vunpack.c.l.b16 %v43
    %v63 = vpack.c.b16 %v58, %v57
    %v64 = vpack.c.b16 %v60, %v59
    %v65 = vpack.c.b16 %v62, %v61
    %vm69 = vcmask 392192
    %v71 = vsel %vm69, %v37, 0
    %73 = vmatprep.subr.bf16.mxu0 0
    %74 = vmatpush1.bf16.msra.mxu0 %v63
    %75 = vmatprep.subr.bf16.mxu0 0
    %76 = vmatpush1.bf16.msra.mxu0 %v64
    %77 = vmatprep.subr.bf16.mxu0 0
    %78 = vmatpush1.bf16.msra.mxu0 %v65
    %79 = vmatprep.subr.bf16.mxu0 0
    %80 = vmatpush1.bf16.msra.mxu0 0
    %81 = vmatprep.subr.bf16.mxu0 0
    %82 = vmatpush1.bf16.msra.mxu0 0
    %83 = vmatprep.subr.bf16.mxu0 0
    %84 = vmatpush1.bf16.msra.mxu0 0
    %85 = vmatprep.subr.bf16.mxu0 0
    %86 = vmatpush1.bf16.msra.mxu0 0
    %87 = vmatprep.subr.bf16.mxu0 0
    %88 = vmatpush1.bf16.msra.mxu0 0
    %89 = vmatprep.subr.bf16.mxu0 0
    %90 = vmatpush1.bf16.msra.mxu0 0
    %91 = vmatprep.subr.bf16.mxu0 0
    %92 = vmatpush1.bf16.msra.mxu0 0
    %93 = vmatprep.subr.bf16.mxu0 0
    %94 = vmatpush1.bf16.msra.mxu0 0
    %95 = vmatprep.subr.bf16.mxu0 0
    %96 = vmatpush1.bf16.msra.mxu0 0
    %97 = vmatprep.subr.bf16.mxu0 0
    %98 = vmatpush1.bf16.msra.mxu0 0
    %99 = vmatprep.subr.bf16.mxu0 0
    %100 = vmatpush1.bf16.msra.mxu0 0
    %101 = vmatprep.subr.bf16.mxu0 0
    %102 = vmatpush1.bf16.msra.mxu0 0
    %103 = vmatprep.subr.bf16.mxu0 0
    %104 = vmatpush1.bf16.msra.mxu0 0
    %105 = vmatprep.mubr.bf16.mxu0 0
    %106 = vmatmul.mubr.bf16.gmra.mrb[0].mxu0 %v71
    %v107 = vpop.f32.mrb[0].mxu0
    %v108 = vadd.f32 %v49, %v107
    %v109 = vpop.f32.mrb[0].mxu0
    %v110 = vpop.f32.mrb[0].mxu0
    %v111 = vpop.f32.mrb[0].mxu0
    %112 = vdwg.mxu0
    %v113 = vld [vmem:[%s3] sm:$0x1]
    %v115 = vlaneseq
    %v116 = vshrl.u32 %v115, 7
    %v117 = vsub.s32 0, %v116
    %v118 = vrot.slane %v113, %v117
    %v120 = vmul.f32 %v108, %v118
    %vm121 = vcmask 517120
    %v122 = vsel %vm121, %v120, 0.0
    %123 = vadd.xlane.f32.xlu0 %v122
    %v124 = vpop.xlane.xlu0 %123
    %v125 = vld [vmem:[#allocation2] sm:$0x1]
    %v127 = vlaneseq
    %v128 = vshrl.u32 %v127, 7
    %v129 = vsub.s32 0, %v128
    %v130 = vrot.slane %v125, %v129
    %v132 = vadd.f32 %v124, %v130
    %vm133 = vcmask 1024
    %134 = vst.msk [vmem:[%s5] sm:$0x3] %vm133, %v132
    // Predicated region
    $region26: #{tpu_custom_call.1} parent=1 // pred_check
      _
    $region27: #{tpu_custom_call.1} parent=1 // pred_check_branch
      %136 = sbr.rel (0) target = $region29
    $region28: #{tpu_custom_call.1} parent=1 // pred_region
      _
    $region29: #{tpu_custom_call.1} parent=1 // pred_fallthru
      _
    // Predicated region
    $region30: #{tpu_custom_call.1} parent=1 // pred_check
      _
    $region31: #{tpu_custom_call.1} parent=1 // pred_check_branch
      %138 = sbr.rel (0) target = $region33
    $region32: #{tpu_custom_call.1} parent=1 // pred_region
      _
    $region33: #{tpu_custom_call.1} parent=1 // pred_fallthru
      _
    %139 = vsyncpa [#allocation4], 1

</llo_original>
